<compile_context>
chip_gen: v7x
topology: tpu7x:2x2x1
jax: 0.10.0
libtpu: 0.0.40
codegen_flags: <defaults>
</compile_context>

<pallas_src>
import math

import jax
import jax.numpy as jnp
from jax.experimental import pallas as pl
from jax.experimental.pallas import tpu as pltpu

_LANE = 128
_MAX_ROW_TILE = 1024    # rows (sublanes) per grid step; 1024 x 384 x 4B = 1.5 MiB/block
_MIN_GRID_STEPS = 4     # keep >= 2 steps per v7x TensorCore when the input allows it


def _cdiv(a: int, b: int) -> int:
    return -(-a // b)


def _round_up(n: int, m: int) -> int:
    return ((n + m - 1) // m) * m


def _vdropout_kernel(s_ref, e_ref, x_ref, o_ref):
    # s_ref: (tm, Cr) f32 per-channel scale (0 or 1/keep) for this row block.
    # e_ref: (Cr, Lb) f32 constant expansion matrix, e[i, j] = (j // D == i).
    # x_ref / o_ref: (tm, Lb) lane-dense contiguous view of x (Lb = Cr * D).
    # The tiny MXU matmul replicates each channel's scale across its D vector
    # components (s_exp[r, j] = s[r, j // D]) with no cross-lane VPU/XLU work.
    s_exp = jnp.dot(s_ref[...], e_ref[...], preferred_element_type=jnp.float32)
    o_ref[...] = (x_ref[...].astype(jnp.float32) * s_exp).astype(o_ref.dtype)


def vdropout(x, drop_rate: float, key, training: bool = True):
    """JAX/Pallas equivalent of _VDropout.forward. x: [..., D] vector channels."""
    if not training or drop_rate == 0.0:
        return x
    if not (0.0 <= drop_rate < 1.0):
        raise ValueError("drop_rate must be in [0, 1).")

    keep = 1.0 - drop_rate
    orig_shape = x.shape
    d = orig_shape[-1]
    c = math.prod(orig_shape[:-1])
    total = c * d

    # Lane-dense flat layout: (R, Lb), Lb = lcm(D, 128). Contiguous reshape -> free.
    lb = (d * _LANE) // math.gcd(d, _LANE)   # lanes per row, multiple of 128 and of D
    cr = lb // d                              # channels per row (<= 128)
    r = _cdiv(c, cr)                          # rows

    # One Bernoulli(keep) draw per vector channel; scale kept in f32 (cast only the
    # product), pre-folded with 1/keep.
    keep_mask = jax.random.bernoulli(key, p=keep, shape=(c,))
    scale = jnp.where(keep_mask, jnp.float32(1.0 / keep), jnp.float32(0.0))

    pad_c = r * cr - c
    if pad_c:
        # Only when c % cr != 0 (pads < one row of elements, but costs a copy).
        scale = jnp.pad(scale, (0, pad_c))
        x_flat = jnp.pad(x.reshape(-1), (0, pad_c * d))
    else:
        x_flat = x.reshape(-1)
    x2 = x_flat.reshape(r, lb)
    scale2 = scale.reshape(r, cr)

    # Constant expansion matrix (cr x lb, <= 192 KiB f32); constant index_map ->
    # fetched into VMEM once and stays resident across the grid.
    expand = (
        jnp.arange(lb, dtype=jnp.int32)[None, :] // d
        == jnp.arange(cr, dtype=jnp.int32)[:, None]
    ).astype(jnp.float32)

    # Row tiling: big payload per step, but keep >= _MIN_GRID_STEPS steps if possible.
    if r <= 8:
        tm = r                               # full-extent block (allowed when < 8)
    else:
        tm = min(_MAX_ROW_TILE, _round_up(_cdiv(r, _MIN_GRID_STEPS), 8))
    grid = (_cdiv(r, tm),)

    out2 = pl.pallas_call(
        _vdropout_kernel,
        out_shape=jax.ShapeDtypeStruct((r, lb), x.dtype),
        grid=grid,
        in_specs=[
            pl.BlockSpec((tm, cr), lambda i: (i, 0)),   # per-channel scales (f32)
            pl.BlockSpec((cr, lb), lambda i: (0, 0)),   # expansion matrix (resident)
            pl.BlockSpec((tm, lb), lambda i: (i, 0)),   # x tile
        ],
        out_specs=pl.BlockSpec((tm, lb), lambda i: (i, 0)),
        compiler_params=pltpu.CompilerParams(
            dimension_semantics=("parallel",),
        ),
    )(scale2, expand, x2)

    out_flat = out2.reshape(-1)
    if pad_c:
        out_flat = out_flat[:total]
    return out_flat.reshape(orig_shape)


if __name__ == "__main__":
    # _VDropout has no real parameters (dummy_param is empty); only drop_rate matters.
    drop_rate = 0.25
    keep = 1.0 - drop_rate

    root = jax.random.PRNGKey(0)
    kx, kmask = jax.random.split(root)

    N, V, D = 128, 32, 3     # nodes, vector channels per node, 3-D vectors
    x = jax.random.normal(kx, (N, V, D), dtype=jnp.float32)

    out = jax.block_until_ready(vdropout(x, drop_rate, kmask, training=True))

    # Pure-JAX reference with the identical mask draw (same key / shape / order).
    ref_mask = jax.random.bernoulli(kmask, p=keep, shape=(N * V,)).reshape(N, V)
    ref_scale = jnp.where(ref_mask, jnp.float32(1.0 / keep), jnp.float32(0.0))
    ref = (x.astype(jnp.float32) * ref_scale[..., None]).astype(x.dtype)

    assert out.shape == x.shape and out.dtype == x.dtype
    assert bool(jnp.allclose(out, ref, rtol=1e-6, atol=1e-6)), "kernel != reference"
    assert bool(
        jnp.array_equal(vdropout(x, drop_rate, kmask, training=False), x)
    ), "eval mode must be identity"
    assert bool(
        jnp.array_equal(vdropout(x, 0.0, kmask, training=True), x)
    ), "drop_rate=0 must be identity"

    print("KERNEL_OK")
</pallas_src>

<mosaic_0001>
module attributes {stable_mosaic.version = 11 : i64} {
  func.func @_vdropout_kernel(%arg0: i32, %arg1: memref<8x128xf32, #tpu.memory_space<vmem>>, %arg2: memref<128x384xf32, #tpu.memory_space<vmem>>, %arg3: memref<8x384xf32, #tpu.memory_space<vmem>>, %arg4: memref<8x384xf32, #tpu.memory_space<vmem>>) attributes {dimension_semantics = [#tpu.dimension_semantics<parallel>], iteration_bounds = array<i64: 4>, scalar_prefetch = 0 : i64, scratch_operands = 0 : i64, tpu.core_type = #tpu.core_type<tc>, window_params = [{transform_indices = @transform_0, window_bounds = array<i64: 8, 128>}, {pipeline_mode = #tpu.pipeline_mode<synchronous>, transform_indices = @transform_1, window_bounds = array<i64: 128, 384>}, {transform_indices = @transform_2, window_bounds = array<i64: 8, 384>}, {transform_indices = @transform_3, window_bounds = array<i64: 8, 384>}]} {
    %c0 = arith.constant 0 : index
    %c0_0 = arith.constant 0 : index
    %0 = vector.load %arg1[%c0, %c0_0] : memref<8x128xf32, #tpu.memory_space<vmem>>, vector<8x128xf32>
    %c0_1 = arith.constant 0 : index
    %c0_2 = arith.constant 0 : index
    %1 = vector.load %arg2[%c0_1, %c0_2] : memref<128x384xf32, #tpu.memory_space<vmem>>, vector<128x384xf32>
    %cst = arith.constant dense<0.000000e+00> : vector<8x384xf32>
    %2 = tpu.matmul %0, %1, %cst {dimension_numbers = #tpu.dot_dimension_numbers<[1], [0], [0], [1], [0, 0, 1, 1], [], []>} : vector<8x128xf32>, vector<128x384xf32>, vector<8x384xf32> -> vector<8x384xf32>
    %c0_3 = arith.constant 0 : index
    %c0_4 = arith.constant 0 : index
    %3 = vector.load %arg3[%c0_3, %c0_4] : memref<8x384xf32, #tpu.memory_space<vmem>>, vector<8x384xf32>
    %4 = arith.mulf %3, %2 : vector<8x384xf32>
    %c0_5 = arith.constant 0 : index
    %c0_6 = arith.constant 0 : index
    %5 = vector.load %arg4[%c0_5, %c0_6] : memref<8x384xf32, #tpu.memory_space<vmem>>, vector<8x384xf32>
    tpu.vector_store %arg4[%c0_5, %c0_6], %4 {strides = array<i32>} : memref<8x384xf32, #tpu.memory_space<vmem>>, vector<8x384xf32>,
    return
  }
  func.func @transform_0(%arg0: i32) -> (i32, i32) {
    %c0_i32 = arith.constant 0 : i32
    %c0_i32_0 = arith.constant 0 : i32
    return %arg0, %c0_i32 : i32, i32
  }
  func.func @transform_1(%arg0: i32) -> (i32, i32) {
    %c0_i32 = arith.constant 0 : i32
    %c0_i32_0 = arith.constant 0 : i32
    %c0_i32_1 = arith.constant 0 : i32
    return %c0_i32, %c0_i32_0 : i32, i32
  }
  func.func @transform_2(%arg0: i32) -> (i32, i32) {
    %c0_i32 = arith.constant 0 : i32
    %c0_i32_0 = arith.constant 0 : i32
    return %arg0, %c0_i32 : i32, i32
  }
  func.func @transform_3(%arg0: i32) -> (i32, i32) {
    %c0_i32 = arith.constant 0 : i32
    %c0_i32_0 = arith.constant 0 : i32
    return %arg0, %c0_i32 : i32, i32
  }
}

</mosaic_0001>

<llo_original>
// kernel: tpu_custom_call.1
$region0: #{tpu_custom_call.1}
  #allocation0 [shape = 'u32[]', space=smem, size = 0x4, offset = 0x4, fixed_abs, tag = 'smem constant byte address 0x4 - core index']
  #allocation1 [shape = 'u32[144,128]{1,0:T(1,128)}', space=vmem, size = 0x12000, scoped, tag = 'internal scratch']
  %s0 = inlined_call_operand.hbm [shape: f32[32,128], index: 0, kind: input, shape index: {}]
  %s1 = inlined_call_operand.hbm [shape: f32[128,384], index: 1, kind: input, shape index: {}]
  %s2 = inlined_call_operand.hbm [shape: f32[32,384], index: 2, kind: input, shape index: {}]
  %s3 = inlined_call_operand.hbm [shape: f32[32,384], index: 3, kind: output, shape index: {}]
  %s4 = sld [smem:[#allocation0]]
  $region57: #{tpu_custom_call.1} parent=0
    _
  %s6 = ssub.s32 1, %s4
  %s7 = scalar_select 0, %s6, %s4
  $region1: #{tpu_custom_call.1} parent=0
    #allocation2 [shape = 'u8[8192]{0}', space=vmem, size = 0x2000, scoped, tag = 'input window, operand 0']
    #allocation3 [shape = 's32[2]{0}', space=sflag, size = 0x8, scoped, tag = 'scoped memory for tpu_custom_call.1']
    #allocation4 [shape = 's32[2]{0}', space=sflag, size = 0x8, scoped, tag = 'scoped memory for tpu_custom_call.1']
    #allocation5 [shape = 'u8[196608]{0}', space=vmem, size = 0x30000, scoped, tag = 'input window, operand 1, single buffered']
    #allocation6 [shape = 's32[1]{0}', space=sflag, size = 0x4, scoped, tag = 'scoped memory for tpu_custom_call.1']
    #allocation7 [shape = 'u8[24576]{0}', space=vmem, size = 0x6000, scoped, tag = 'input window, operand 2']
    #allocation8 [shape = 'u8[24576]{0}', space=vmem, size = 0x6000, scoped, tag = 'output window, operand 0']
    %8 = vsyncpa [#allocation3], 0
    %s9 = scalar_lea.sflag [#allocation3], 1
    %10 = vsyncpa %s9, 0
    %11 = vsyncpa [#allocation6], 0
    %12 = vsyncpa [#allocation4], 0
    %s13 = scalar_lea.sflag [#allocation4], 1
    %14 = vsyncpa %s13, 0
    loop: start=0, step=1, limit=6
    $region2: #{tpu_custom_call.1} parent=1 // loop_pre_header
      _
    $region3: #{tpu_custom_call.1} parent=1 // loop_header
      %s16 = sphi 0, %s20
      %p17 = scmp.ge.s32.totalorder %s16, 6
      %s26 = sphi 0, %s28
      %s29 = sphi 0, %s26
      %s30 = sphi 0, %s29
      %s46 = sphi 0, %s30
      %s50 = sphi 0, %s50
      %s52 = sphi 0, %s50
      %s53 = sphi 0, %s52
      %s67 = sphi 0, %s53
      %s73 = sphi 0, %s75
      %s76 = sphi 0, %s73
      %s77 = sphi 0, %s76
      %s93 = sphi 0, %s77
      %s99 = sphi 0, %s101
      %s102 = sphi 0, %s99
      %s103 = sphi 0, %s102
      %s119 = sphi 0, %s103
    $region4: #{tpu_custom_call.1} parent=1 // loop_header_branch
      %19 = sbr.rel (%p17) target = $region8
    $region5: #{tpu_custom_call.1} parent=1 // loop_body
      %s21 = ssub.s32 %s16, 1
      %s22 = ssub.s32 %s16, 2
      %s23 = sadd.s32 %s16, 1
      %s24 = ssub.s32 %s16, %s23
      %p25 = scmp.eq.s32.totalorder %s24, 0
      %s27 = sadd.s32 %s26, 1
      %s28 = scalar_select %p25, %s26, %s27
      %p31 = pneg %p25
      %p32 = scmp.eq.s32.totalorder %s16, 3
      %p33 = por %p31, %p32
      %p34 = scmp.ne.s32.totalorder %s26, %s29
      %p35 = scmp.eq.s32.totalorder %s16, 0
      %p36 = por %p34, %p35
      %p37 = scmp.ne.s32.totalorder %s26, %s29
      %p38 = scmp.eq.s32.totalorder %s21, 3
      %p39 = por %p37, %p38
      %p40 = scmp.ne.s32.totalorder %s29, %s30
      %p41 = scmp.eq.s32.totalorder %s21, 0
      %p42 = por %p40, %p41
      %p43 = scmp.ne.s32.totalorder %s29, %s30
      %p44 = scmp.eq.s32.totalorder %s22, 3
      %p45 = por %p43, %p44
      %p47 = scmp.ne.s32.totalorder %s30, %s46
      %p48 = scmp.eq.s32.totalorder %s22, 0
      %p49 = por %p47, %p48
      %s51 = sadd.s32 %s50, 1
      %p54 = scmp.eq.s32.totalorder %s16, 3
      %p55 = scmp.ne.s32.totalorder %s50, %s52
      %p56 = scmp.eq.s32.totalorder %s16, 0
      %p57 = por %p55, %p56
      %p58 = scmp.ne.s32.totalorder %s50, %s52
      %p59 = scmp.eq.s32.totalorder %s21, 3
      %p60 = por %p58, %p59
      %p61 = scmp.ne.s32.totalorder %s52, %s53
      %p62 = scmp.eq.s32.totalorder %s21, 0
      %p63 = por %p61, %p62
      %p64 = scmp.ne.s32.totalorder %s52, %s53
      %p65 = scmp.eq.s32.totalorder %s22, 3
      %p66 = por %p64, %p65
      %p68 = scmp.ne.s32.totalorder %s53, %s67
      %p69 = scmp.eq.s32.totalorder %s22, 0
      %p70 = por %p68, %p69
      %s71 = ssub.s32 %s16, %s23
      %p72 = scmp.eq.s32.totalorder %s71, 0
      %s74 = sadd.s32 %s73, 1
      %s75 = scalar_select %p72, %s73, %s74
      %p78 = pneg %p72
      %p79 = scmp.eq.s32.totalorder %s16, 3
      %p80 = por %p78, %p79
      %p81 = scmp.ne.s32.totalorder %s73, %s76
      %p82 = scmp.eq.s32.totalorder %s16, 0
      %p83 = por %p81, %p82
      %p84 = scmp.ne.s32.totalorder %s73, %s76
      %p85 = scmp.eq.s32.totalorder %s21, 3
      %p86 = por %p84, %p85
      %p87 = scmp.ne.s32.totalorder %s76, %s77
      %p88 = scmp.eq.s32.totalorder %s21, 0
      %p89 = por %p87, %p88
      %p90 = scmp.ne.s32.totalorder %s76, %s77
      %p91 = scmp.eq.s32.totalorder %s22, 3
      %p92 = por %p90, %p91
      %p94 = scmp.ne.s32.totalorder %s77, %s93
      %p95 = scmp.eq.s32.totalorder %s22, 0
      %p96 = por %p94, %p95
      %s97 = ssub.s32 %s16, %s23
      %p98 = scmp.eq.s32.totalorder %s97, 0
      %s100 = sadd.s32 %s99, 1
      %s101 = scalar_select %p98, %s99, %s100
      %p104 = pneg %p98
      %p105 = scmp.eq.s32.totalorder %s16, 3
      %p106 = por %p104, %p105
      %p107 = scmp.ne.s32.totalorder %s99, %s102
      %p108 = scmp.eq.s32.totalorder %s16, 0
      %p109 = por %p107, %p108
      %p110 = scmp.ne.s32.totalorder %s99, %s102
      %p111 = scmp.eq.s32.totalorder %s21, 3
      %p112 = por %p110, %p111
      %p113 = scmp.ne.s32.totalorder %s102, %s103
      %p114 = scmp.eq.s32.totalorder %s21, 0
      %p115 = por %p113, %p114
      %p116 = scmp.ne.s32.totalorder %s102, %s103
      %p117 = scmp.eq.s32.totalorder %s22, 3
      %p118 = por %p116, %p117
      %p120 = scmp.ne.s32.totalorder %s103, %s119
      %p121 = scmp.eq.s32.totalorder %s22, 0
      %p122 = por %p120, %p121
      %p123 = scmp.le.s32.totalorder 1, %s16
      %p124 = scmp.lt.s32.totalorder %s16, 5
      %p125 = pnand %p123, %p124
      %p126 = pneg %p125
      // Predicated region
      $region9: #{tpu_custom_call.1} parent=5 // pred_check
        _
      $region10: #{tpu_custom_call.1} parent=5 // pred_check_branch
        %128 = sbr.rel (%p125) target = $region12
      $region11: #{tpu_custom_call.1} parent=5 // pred_region
        %s129 = ssub.s32 %s16, 1
        // Predicated region
        $region13: #{tpu_custom_call.1} parent=11 // pred_check
          %p130 = pneg %p63
        $region14: #{tpu_custom_call.1} parent=11 // pred_check_branch
          %132 = sbr.rel (%p130) target = $region16
        $region15: #{tpu_custom_call.1} parent=11 // pred_region
          %s134 = ssub.s32 6144, 6144
          %135 = vsyncadd [#allocation6], %s134
          %s136 = sshll.u32 [#allocation5], 4
          %s137 = int_to_ptr.vmem [resolvable:$true] %s136
          %142 = dma.hbm_to_vmem [thread:$0]  %s1, 6144, %s137, [#allocation6], 384, 384, 24
        $region16: #{tpu_custom_call.1} parent=11 // pred_fallthru
          _
      $region12: #{tpu_custom_call.1} parent=5 // pred_fallthru
        _
      %p143 = scmp.lt.s32.totalorder %s16, 4
      // Predicated region
      $region17: #{tpu_custom_call.1} parent=5 // pred_check
        %p144 = pneg %p143
      $region18: #{tpu_custom_call.1} parent=5 // pred_check_branch
        %146 = sbr.rel (%p144) target = $region20
      $region19: #{tpu_custom_call.1} parent=5 // pred_region
        // Predicated region
        $region21: #{tpu_custom_call.1} parent=19 // pred_check
          %p147 = pneg %p36
        $region22: #{tpu_custom_call.1} parent=19 // pred_check_branch
          %149 = sbr.rel (%p147) target = $region24
        $region23: #{tpu_custom_call.1} parent=19 // pred_region
          %s150 = sand.u32 %s16, 1
          %s151 = scalar_lea.sflag [#allocation3], %s150
          %s152 = sand.u32 %s26, 1
          %s153 = smul.addr %s152, 8
          %s154 = scalar_lea.vmem [#allocation2], %s153
          %s156 = ssub.s32 128, 128
          %157 = vsyncadd %s151, %s156
          %s158 = smul.addr %s16, 128
          %s159 = scalar_lea.hbm %s0, %s158
          %s161 = sshll.u32 %s154, 4
          %s162 = int_to_ptr.vmem [resolvable:$true] %s161
          %164 = dma.hbm_to_vmem [thread:$0]  %s159, 128, %s162, %s151
        $region24: #{tpu_custom_call.1} parent=19 // pred_fallthru
          _
        // Predicated region
        $region25: #{tpu_custom_call.1} parent=19 // pred_check
          %p165 = pneg %p83
        $region26: #{tpu_custom_call.1} parent=19 // pred_check_branch
          %167 = sbr.rel (%p165) target = $region28
        $region27: #{tpu_custom_call.1} parent=19 // pred_region
          %s168 = sand.u32 %s16, 1
          %s169 = scalar_lea.sflag [#allocation3], %s168
          %s170 = sand.u32 %s73, 1
          %s171 = smul.addr %s170, 24
          %s172 = scalar_lea.vmem [#allocation7], %s171
          %s174 = ssub.s32 384, 384
          %175 = vsyncadd %s169, %s174
          %s176 = smul.addr %s16, 3
          %s177 = smul.addr %s176, 128
          %s178 = scalar_lea.hbm %s2, %s177
          %s180 = sshll.u32 %s172, 4
          %s181 = int_to_ptr.vmem [resolvable:$true] %s180
          %183 = dma.hbm_to_vmem [thread:$0]  %s178, 384, %s181, %s169
        $region28: #{tpu_custom_call.1} parent=19 // pred_fallthru
          _
      $region20: #{tpu_custom_call.1} parent=5 // pred_fallthru
        _
      %p184 = scmp.le.s32.totalorder 1, %s16
      %p185 = scmp.lt.s32.totalorder %s16, 5
      %p186 = pnand %p184, %p185
      %p187 = pneg %p186
      // Predicated region
      $region29: #{tpu_custom_call.1} parent=5 // pred_check
        _
      $region30: #{tpu_custom_call.1} parent=5 // pred_check_branch
        %189 = sbr.rel (%p186) target = $region32
      $region31: #{tpu_custom_call.1} parent=5 // pred_region
        %s190 = ssub.s32 %s16, 1
        %s191 = sand.u32 %s21, 1
        %s192 = scalar_lea.sflag [#allocation3], %s191
        %s193 = sand.u32 %s29, 1
        %s194 = smul.addr %s193, 8
        %s195 = scalar_lea.vmem [#allocation2], %s194
        // Predicated region
        $region33: #{tpu_custom_call.1} parent=31 // pred_check
          %p196 = pneg %p42
        $region34: #{tpu_custom_call.1} parent=31 // pred_check_branch
          %198 = sbr.rel (%p196) target = $region36
        $region35: #{tpu_custom_call.1} parent=31 // pred_region
          %199 = dma.done %s192, 128
        $region36: #{tpu_custom_call.1} parent=31 // pred_fallthru
          _
        // Predicated region
        $region37: #{tpu_custom_call.1} parent=31 // pred_check
          %p200 = pneg %p63
        $region38: #{tpu_custom_call.1} parent=31 // pred_check_branch
          %202 = sbr.rel (%p200) target = $region40
        $region39: #{tpu_custom_call.1} parent=31 // pred_region
          %203 = dma.done [#allocation6], 6144
        $region40: #{tpu_custom_call.1} parent=31 // pred_fallthru
          _
        %s204 = sand.u32 %s21, 1
        %s205 = scalar_lea.sflag [#allocation3], %s204
        %s206 = sand.u32 %s76, 1
        %s207 = smul.addr %s206, 24
        %s208 = scalar_lea.vmem [#allocation7], %s207
        // Predicated region
        $region41: #{tpu_custom_call.1} parent=31 // pred_check
          %p209 = pneg %p89
        $region42: #{tpu_custom_call.1} parent=31 // pred_check_branch
          %211 = sbr.rel (%p209) target = $region44
        $region43: #{tpu_custom_call.1} parent=31 // pred_region
          %212 = dma.done %s205, 384
        $region44: #{tpu_custom_call.1} parent=31 // pred_fallthru
          _
        %s213 = sand.u32 %s21, 1
        %s214 = scalar_lea.sflag [#allocation3], %s213
        %s215 = sand.u32 %s29, 1
        %s216 = smul.addr %s215, 8
        %s217 = scalar_lea.vmem [#allocation2], %s216
        %p218 = pneg %p42
        %p219 = pneg %p39
        %p220 = pneg %p63
        %p221 = pneg %p60
        %s222 = sand.u32 %s21, 1
        %s223 = scalar_lea.sflag [#allocation3], %s222
        %s224 = sand.u32 %s76, 1
        %s225 = smul.addr %s224, 24
        %s226 = scalar_lea.vmem [#allocation7], %s225
        %p227 = pneg %p89
        %p228 = pneg %p86
        %p229 = pneg %p115
        %p230 = pneg %p112
        %s231 = sand.u32 %s102, 1
        %s232 = scalar_lea.sflag [#allocation4], %s231
        %s233 = sand.u32 %s102, 1
        %s234 = smul.addr %s233, 24
        %s235 = scalar_lea.vmem [#allocation8], %s234
        %v236 = vld [vmem:[%s195] sm:$0xff]
        %v237 = vld [vmem:[#allocation5] sm:$0xff]
        %v238 = vld [vmem:[#allocation5 + $0x8] sm:$0xff]
        %v239 = vld [vmem:[#allocation5 + $0x10] sm:$0xff]
        %v240 = vld [vmem:[#allocation5 + $0x18] sm:$0xff]
        %v241 = vld [vmem:[#allocation5 + $0x20] sm:$0xff]
        %v242 = vld [vmem:[#allocation5 + $0x28] sm:$0xff]
        %v243 = vld [vmem:[#allocation5 + $0x30] sm:$0xff]
        %v244 = vld [vmem:[#allocation5 + $0x38] sm:$0xff]
        %v245 = vld [vmem:[#allocation5 + $0x40] sm:$0xff]
        %v246 = vld [vmem:[#allocation5 + $0x48] sm:$0xff]
        %v247 = vld [vmem:[#allocation5 + $0x50] sm:$0xff]
        %v248 = vld [vmem:[#allocation5 + $0x58] sm:$0xff]
        %v249 = vld [vmem:[#allocation5 + $0x60] sm:$0xff]
        %v250 = vld [vmem:[#allocation5 + $0x68] sm:$0xff]
        %v251 = vld [vmem:[#allocation5 + $0x70] sm:$0xff]
        %v252 = vld [vmem:[#allocation5 + $0x78] sm:$0xff]
        %v253 = vld [vmem:[#allocation5 + $0x80] sm:$0xff]
        %v254 = vld [vmem:[#allocation5 + $0x88] sm:$0xff]
        %v255 = vld [vmem:[#allocation5 + $0x90] sm:$0xff]
        %v256 = vld [vmem:[#allocation5 + $0x98] sm:$0xff]
        %v257 = vld [vmem:[#allocation5 + $0xa0] sm:$0xff]
        %v258 = vld [vmem:[#allocation5 + $0xa8] sm:$0xff]
        %v259 = vld [vmem:[#allocation5 + $0xb0] sm:$0xff]
        %v260 = vld [vmem:[#allocation5 + $0xb8] sm:$0xff]
        %v261 = vld [vmem:[#allocation5 + $0xc0] sm:$0xff]
        %v262 = vld [vmem:[#allocation5 + $0xc8] sm:$0xff]
        %v263 = vld [vmem:[#allocation5 + $0xd0] sm:$0xff]
        %v264 = vld [vmem:[#allocation5 + $0xd8] sm:$0xff]
        %v265 = vld [vmem:[#allocation5 + $0xe0] sm:$0xff]
        %v266 = vld [vmem:[#allocation5 + $0xe8] sm:$0xff]
        %v267 = vld [vmem:[#allocation5 + $0xf0] sm:$0xff]
        %v268 = vld [vmem:[#allocation5 + $0xf8] sm:$0xff]
        %v269 = vld [vmem:[#allocation5 + $0x100] sm:$0xff]
        %v270 = vld [vmem:[#allocation5 + $0x108] sm:$0xff]
        %v271 = vld [vmem:[#allocation5 + $0x110] sm:$0xff]
        %v272 = vld [vmem:[#allocation5 + $0x118] sm:$0xff]
        %v273 = vld [vmem:[#allocation5 + $0x120] sm:$0xff]
        %v274 = vld [vmem:[#allocation5 + $0x128] sm:$0xff]
        %v275 = vld [vmem:[#allocation5 + $0x130] sm:$0xff]
        %v276 = vld [vmem:[#allocation5 + $0x138] sm:$0xff]
        %v277 = vld [vmem:[#allocation5 + $0x140] sm:$0xff]
        %v278 = vld [vmem:[#allocation5 + $0x148] sm:$0xff]
        %v279 = vld [vmem:[#allocation5 + $0x150] sm:$0xff]
        %v280 = vld [vmem:[#allocation5 + $0x158] sm:$0xff]
        %v281 = vld [vmem:[#allocation5 + $0x160] sm:$0xff]
        %v282 = vld [vmem:[#allocation5 + $0x168] sm:$0xff]
        %v283 = vld [vmem:[#allocation5 + $0x170] sm:$0xff]
        %v284 = vld [vmem:[#allocation5 + $0x178] sm:$0xff]
        %285 = vmatprep.subr.mxu0 %v238
        %286 = vmatpush1.msra.mxu0 %v237
        %287 = vmatprep.subr.mxu0 %v241
        %288 = vmatpush1.msra.mxu0 %v240
        %289 = vmatprep.subr.mxu0 %v244
        %290 = vmatpush1.msra.mxu0 %v243
        %291 = vmatprep.subr.mxu0 %v247
        %292 = vmatpush1.msra.mxu0 %v246
        %293 = vmatprep.subr.mxu0 %v250
        %294 = vmatpush1.msra.mxu0 %v249
        %295 = vmatprep.subr.mxu0 %v253
        %296 = vmatpush1.msra.mxu0 %v252
        %297 = vmatprep.subr.mxu0 %v256
        %298 = vmatpush1.msra.mxu0 %v255
        %299 = vmatprep.subr.mxu0 %v259
        %300 = vmatpush1.msra.mxu0 %v258
        %301 = vmatprep.subr.mxu0 %v262
        %302 = vmatpush1.msra.mxu0 %v261
        %303 = vmatprep.subr.mxu0 %v265
        %304 = vmatpush1.msra.mxu0 %v264
        %305 = vmatprep.subr.mxu0 %v268
        %306 = vmatpush1.msra.mxu0 %v267
        %307 = vmatprep.subr.mxu0 %v271
        %308 = vmatpush1.msra.mxu0 %v270
        %309 = vmatprep.subr.mxu0 %v274
        %310 = vmatpush1.msra.mxu0 %v273
        %311 = vmatprep.subr.mxu0 %v277
        %312 = vmatpush1.msra.mxu0 %v276
        %313 = vmatprep.subr.mxu0 %v280
        %314 = vmatpush1.msra.mxu0 %v279
        %315 = vmatprep.subr.mxu0 %v283
        %316 = vmatpush1.msra.mxu0 %v282
        %317 = vmatprep.subr.mxu0 0.0
        %318 = vmatpush1.msra.mxu0 0.0
        %319 = vmatprep.subr.mxu0 0.0
        %320 = vmatpush1.msra.mxu0 0.0
        %321 = vmatprep.subr.mxu0 0.0
        %322 = vmatpush1.msra.mxu0 0.0
        %323 = vmatprep.subr.mxu0 0.0
        %324 = vmatpush1.msra.mxu0 0.0
        %325 = vmatprep.subr.mxu0 0.0
        %326 = vmatpush1.msra.mxu0 0.0
        %327 = vmatprep.subr.mxu0 0.0
        %328 = vmatpush1.msra.mxu0 0.0
        %329 = vmatprep.subr.mxu0 0.0
        %330 = vmatpush1.msra.mxu0 0.0
        %331 = vmatprep.subr.mxu0 0.0
        %332 = vmatpush1.msra.mxu0 0.0
        %333 = vmatprep.subr.mxu0 0.0
        %334 = vmatpush1.msra.mxu0 0.0
        %335 = vmatprep.subr.mxu0 0.0
        %336 = vmatpush1.msra.mxu0 0.0
        %337 = vmatprep.subr.mxu0 0.0
        %338 = vmatpush1.msra.mxu0 0.0
        %339 = vmatprep.subr.mxu0 0.0
        %340 = vmatpush1.msra.mxu0 0.0
        %341 = vmatprep.subr.mxu0 0.0
        %342 = vmatpush1.msra.mxu0 0.0
        %343 = vmatprep.subr.mxu0 0.0
        %344 = vmatpush1.msra.mxu0 0.0
        %345 = vmatprep.subr.mxu0 0.0
        %346 = vmatpush1.msra.mxu0 0.0
        %347 = vmatprep.subr.mxu0 0.0
        %348 = vmatpush1.msra.mxu0 0.0
        %349 = vmatprep.mubr.f32.mxu0 0.0
        %350 = vmatmul.mubr.f32.gmra.mrb[0].mxu0 %v236
        %v351 = vpop.f32.mrb[0].mxu0
        %v352 = vadd.f32 0.0, %v351
        %v353 = vpop.f32.mrb[0].mxu0
        %v354 = vadd.f32 0.0, %v353
        %355 = vdwg.mxu0
        %356 = vmatprep.subr.mxu0 0.0
        %357 = vmatpush1.msra.mxu0 %v239
        %358 = vmatprep.subr.mxu0 0.0
        %359 = vmatpush1.msra.mxu0 %v242
        %360 = vmatprep.subr.mxu0 0.0
        %361 = vmatpush1.msra.mxu0 %v245
        %362 = vmatprep.subr.mxu0 0.0
        %363 = vmatpush1.msra.mxu0 %v248
        %364 = vmatprep.subr.mxu0 0.0
        %365 = vmatpush1.msra.mxu0 %v251
        %366 = vmatprep.subr.mxu0 0.0
        %367 = vmatpush1.msra.mxu0 %v254
        %368 = vmatprep.subr.mxu0 0.0
        %369 = vmatpush1.msra.mxu0 %v257
        %370 = vmatprep.subr.mxu0 0.0
        %371 = vmatpush1.msra.mxu0 %v260
        %372 = vmatprep.subr.mxu0 0.0
        %373 = vmatpush1.msra.mxu0 %v263
        %374 = vmatprep.subr.mxu0 0.0
        %375 = vmatpush1.msra.mxu0 %v266
        %376 = vmatprep.subr.mxu0 0.0
        %377 = vmatpush1.msra.mxu0 %v269
        %378 = vmatprep.subr.mxu0 0.0
        %379 = vmatpush1.msra.mxu0 %v272
        %380 = vmatprep.subr.mxu0 0.0
        %381 = vmatpush1.msra.mxu0 %v275
        %382 = vmatprep.subr.mxu0 0.0
        %383 = vmatpush1.msra.mxu0 %v278
        %384 = vmatprep.subr.mxu0 0.0
        %385 = vmatpush1.msra.mxu0 %v281
        %386 = vmatprep.subr.mxu0 0.0
        %387 = vmatpush1.msra.mxu0 %v284
        %388 = vmatprep.subr.mxu0 0.0
        %389 = vmatpush1.msra.mxu0 0.0
        %390 = vmatprep.subr.mxu0 0.0
        %391 = vmatpush1.msra.mxu0 0.0
        %392 = vmatprep.subr.mxu0 0.0
        %393 = vmatpush1.msra.mxu0 0.0
        %394 = vmatprep.subr.mxu0 0.0
        %395 = vmatpush1.msra.mxu0 0.0
        %396 = vmatprep.subr.mxu0 0.0
        %397 = vmatpush1.msra.mxu0 0.0
        %398 = vmatprep.subr.mxu0 0.0
        %399 = vmatpush1.msra.mxu0 0.0
        %400 = vmatprep.subr.mxu0 0.0
        %401 = vmatpush1.msra.mxu0 0.0
        %402 = vmatprep.subr.mxu0 0.0
        %403 = vmatpush1.msra.mxu0 0.0
        %404 = vmatprep.subr.mxu0 0.0
        %405 = vmatpush1.msra.mxu0 0.0
        %406 = vmatprep.subr.mxu0 0.0
        %407 = vmatpush1.msra.mxu0 0.0
        %408 = vmatprep.subr.mxu0 0.0
        %409 = vmatpush1.msra.mxu0 0.0
        %410 = vmatprep.subr.mxu0 0.0
        %411 = vmatpush1.msra.mxu0 0.0
        %412 = vmatprep.subr.mxu0 0.0
        %413 = vmatpush1.msra.mxu0 0.0
        %414 = vmatprep.subr.mxu0 0.0
        %415 = vmatpush1.msra.mxu0 0.0
        %416 = vmatprep.subr.mxu0 0.0
        %417 = vmatpush1.msra.mxu0 0.0
        %418 = vmatprep.subr.mxu0 0.0
        %419 = vmatpush1.msra.mxu0 0.0
        %420 = vmatprep.mubr.f32.mxu0 0.0
        %421 = vmatmul.mubr.f32.gmra.mrb[0].mxu0 %v236
        %v422 = vpop.f32.mrb[0].mxu0
        %v423 = vadd.f32 0.0, %v422
        %v424 = vpop.f32.mrb[0].mxu0
        %425 = vdwg.mxu0
        %v426 = vld [vmem:[%s208] sm:$0xff]
        %v427 = vld [vmem:[%s208 + $0x8] sm:$0xff]
        %v428 = vld [vmem:[%s208 + $0x10] sm:$0xff]
        %v429 = vmul.f32 %v426, %v352
        %v430 = vmul.f32 %v427, %v354
        %v431 = vmul.f32 %v428, %v423
        %432 = vst [vmem:[%s235] sm:$0xff] %v429
        %433 = vst [vmem:[%s235 + $0x8] sm:$0xff] %v430
        %434 = vst [vmem:[%s235 + $0x10] sm:$0xff] %v431
        %s435 = sand.u32 %s102, 1
        %s436 = scalar_lea.sflag [#allocation4], %s435
        %s437 = sand.u32 %s102, 1
        %s438 = smul.addr %s437, 24
        %s439 = scalar_lea.vmem [#allocation8], %s438
        // Predicated region
        $region45: #{tpu_custom_call.1} parent=31 // pred_check
          %p440 = pneg %p112
        $region46: #{tpu_custom_call.1} parent=31 // pred_check_branch
          %442 = sbr.rel (%p440) target = $region48
        $region47: #{tpu_custom_call.1} parent=31 // pred_region
          %s444 = ssub.s32 384, 384
          %445 = vsyncadd %s436, %s444
          %s446 = smul.addr %s21, 3
          %s447 = smul.addr %s446, 128
          %s448 = scalar_lea.hbm %s3, %s447
          %s450 = sshll.u32 %s439, 4
          %s451 = int_to_ptr.vmem [resolvable:$true] %s450
          %453 = dma.vmem_to_hbm [thread:$0]  %s451, 384, %s448, %s436
        $region48: #{tpu_custom_call.1} parent=31 // pred_fallthru
          _
      $region32: #{tpu_custom_call.1} parent=5 // pred_fallthru
        _
      %p454 = scmp.le.s32.totalorder 2, %s16
      // Predicated region
      $region49: #{tpu_custom_call.1} parent=5 // pred_check
        %p455 = pneg %p454
      $region50: #{tpu_custom_call.1} parent=5 // pred_check_branch
        %457 = sbr.rel (%p455) target = $region52
      $region51: #{tpu_custom_call.1} parent=5 // pred_region
        %s458 = ssub.s32 %s16, 2
        // Predicated region
        $region53: #{tpu_custom_call.1} parent=51 // pred_check
          %p459 = pneg %p118
        $region54: #{tpu_custom_call.1} parent=51 // pred_check_branch
          %461 = sbr.rel (%p459) target = $region56
        $region55: #{tpu_custom_call.1} parent=51 // pred_region
          %s462 = sand.u32 %s103, 1
          %s463 = scalar_lea.sflag [#allocation4], %s462
          %s464 = sand.u32 %s103, 1
          %s465 = smul.addr %s464, 24
          %s466 = scalar_lea.vmem [#allocation8], %s465
          %467 = dma.done %s463, 384
        $region56: #{tpu_custom_call.1} parent=51 // pred_fallthru
          _
      $region52: #{tpu_custom_call.1} parent=5 // pred_fallthru
        _
    $region6: #{tpu_custom_call.1} parent=1 // loop_footer
      %s20 = sadd.s32 1, %s16
    $region7: #{tpu_custom_call.1} parent=1 // loop_footer_branch
      %15 = sbr.rel target = $region3
    $region8: #{tpu_custom_call.1} parent=1 // loop_exit
      _
    %468 = vsyncpa [#allocation3], 1
    %s469 = scalar_lea.sflag [#allocation3], 1
    %470 = vsyncpa %s469, 1
    %471 = vsyncpa [#allocation6], 1
    %472 = vsyncpa [#allocation4], 1
    %s473 = scalar_lea.sflag [#allocation4], 1
    %474 = vsyncpa %s473, 1

</llo_original>
